<compile_context>
chip_gen: v7x
topology: tpu7x:2x2x1
jax: 0.10.0
libtpu: 0.0.40
codegen_flags: <defaults>
</compile_context>

<pallas_src>
import functools
import math

import jax
import jax.numpy as jnp
from jax.experimental import pallas as pl
from jax.experimental.pallas import tpu as pltpu

_NEG_LOG_1E4 = -math.log(1e-4)  # -log(clamp(0, 1e-4, 1)) = 9.2103...


def _nce_rce_kernel(logits_ref, labels_ref, loss_ref, *, alpha: float, beta: float):
    x = logits_ref[...].astype(jnp.float32)            # (TM, C)
    lbl = labels_ref[...]                               # (TM, 1) int32
    C = x.shape[-1]

    # Row-wise stable softmax building blocks.
    m = jnp.max(x, axis=-1, keepdims=True)               # (TM, 1)
    e = jnp.exp(x - m)                                    # (TM, C)
    s = jnp.sum(e, axis=-1, keepdims=True)                # (TM, 1)
    log_s = jnp.log(s)                                    # (TM, 1)
    inv_s = pl.reciprocal(s, approx=False)                # (TM, 1)

    # Gather x[label] via one-hot reduction (no full log-softmax materialized).
    cls = jax.lax.broadcasted_iota(jnp.int32, x.shape, 1)  # (TM, C)
    onehot = (cls == lbl).astype(jnp.float32)              # (TM, C)
    x_lbl = jnp.sum(onehot * x, axis=-1, keepdims=True)    # (TM, 1)
    sum_x = jnp.sum(x, axis=-1, keepdims=True)             # (TM, 1)

    # NCE:  logp_c = x_c - (m + log s)
    #       nce = (-logp_label) / (-sum_c logp_c)
    z = m + log_s                                          # (TM, 1)
    neg_logp_lbl = z - x_lbl                               # (TM, 1)
    neg_sum_logp = C * z - sum_x                           # (TM, 1)
    nce = neg_logp_lbl / neg_sum_logp                      # (TM, 1)

    # RCE:  -sum_c clamp(pred_c,1e-7,1) * log(clamp(onehot_c,1e-4,1))
    #     = -log(1e-4) * (sum_c clamp(pred_c) - clamp(pred_label))
    pred_c = jnp.clip(e * inv_s, 1e-7, 1.0)                # (TM, C)
    sum_pred = jnp.sum(pred_c, axis=-1, keepdims=True)     # (TM, 1)
    p_lbl = jnp.clip(jnp.exp(x_lbl - m) * inv_s, 1e-7, 1.0)
    rce = _NEG_LOG_1E4 * (sum_pred - p_lbl)                # (TM, 1)

    loss_ref[...] = alpha * nce + beta * rce


def _choose_tile_m(N, C, itemsize, target_block_bytes=4 << 20):
    """Pick a row-tile: ~4 MiB logits block, multiple of 8, not far beyond N."""
    rows = target_block_bytes // max(1, C * itemsize)
    rows = max(8, min(1024, rows))
    rows = (rows // 8) * 8
    n_pad8 = ((N + 7) // 8) * 8
    return max(8, min(rows, n_pad8))


def nce_and_rce(logits, labels, alpha, beta, reduction="mean", *, tile_m=None):
    """NCEandRCE forward. logits: (N, C) float (f32 or bf16), labels: (N,) int."""
    N, C = logits.shape
    labels2d = labels.astype(jnp.int32).reshape(N, 1)

    itemsize = jnp.dtype(logits.dtype).itemsize
    if tile_m is None:
        tile_m = _choose_tile_m(N, C, itemsize)

    # Ragged N: pad rows up to a tile multiple; padded rows are sliced off below.
    n_pad = pl.cdiv(N, tile_m) * tile_m
    if n_pad != N:
        logits = jnp.pad(logits, ((0, n_pad - N), (0, 0)))
        labels2d = jnp.pad(labels2d, ((0, n_pad - N), (0, 0)))

    # VMEM budget: double-buffered logits/labels/output blocks + headroom.
    # Kept <= 48 MiB so it is safe on v7x (64 MiB physical) as well as v5e/v6e.
    block_bytes = tile_m * C * itemsize + tile_m * 4 + tile_m * 4
    vmem_limit = int(min(max(4 * block_bytes + (8 << 20), 16 << 20), 48 << 20))

    kernel = functools.partial(_nce_rce_kernel, alpha=float(alpha), beta=float(beta))
    per_sample = pl.pallas_call(
        kernel,
        out_shape=jax.ShapeDtypeStruct((n_pad, 1), jnp.float32),
        grid_spec=pltpu.PrefetchScalarGridSpec(
            num_scalar_prefetch=0,
            grid=(n_pad // tile_m,),
            in_specs=[
                pl.BlockSpec((tile_m, C), lambda i: (i, 0)),
                pl.BlockSpec((tile_m, 1), lambda i: (i, 0)),
            ],
            out_specs=pl.BlockSpec((tile_m, 1), lambda i: (i, 0)),
        ),
        compiler_params=pltpu.CompilerParams(
            dimension_semantics=("parallel",),
            vmem_limit_bytes=vmem_limit,
        ),
    )(logits, labels2d)

    per_sample = per_sample[:N, 0]
    if reduction == "mean":
        return jnp.mean(per_sample)
    elif reduction == "none":
        return per_sample
    else:
        raise ValueError("reduction should be mean or none")


def _nce_and_rce_ref(logits, labels, alpha, beta, num_classes, reduction="mean"):
    """Pure-JAX reference mirroring the PyTorch NCEandRCE module."""
    x = logits.astype(jnp.float32)
    logp = jax.nn.log_softmax(x, axis=1)
    onehot = jax.nn.one_hot(labels, num_classes, dtype=jnp.float32)
    nce = -jnp.sum(onehot * logp, axis=1) / (-jnp.sum(logp, axis=1))
    pred = jnp.clip(jax.nn.softmax(x, axis=1), 1e-7, 1.0)
    rce = -jnp.sum(pred * jnp.log(jnp.clip(onehot, 1e-4, 1.0)), axis=1)
    loss = alpha * nce + beta * rce
    return jnp.mean(loss) if reduction == "mean" else loss


if __name__ == "__main__":
    key = jax.random.PRNGKey(0)
    k1, k2, k3, k4 = jax.random.split(key, 4)

    # Small shapes implied by the module: batch of 8 samples, 16 classes.
    N, C = 8, 16
    alpha, beta = 1.0, 0.1
    logits = jax.random.normal(k1, (N, C), dtype=jnp.float32) * 3.0
    labels = jax.random.randint(k2, (N,), 0, C, dtype=jnp.int32)

    out = jax.block_until_ready(nce_and_rce(logits, labels, alpha, beta, "mean"))
    ref = _nce_and_rce_ref(logits, labels, alpha, beta, C, "mean")
    assert jnp.allclose(out, ref, rtol=1e-4, atol=1e-5), (out, ref)

    out_n = jax.block_until_ready(nce_and_rce(logits, labels, alpha, beta, "none"))
    ref_n = _nce_and_rce_ref(logits, labels, alpha, beta, C, "none")
    assert jnp.allclose(out_n, ref_n, rtol=1e-4, atol=1e-5), (out_n, ref_n)

    # Ragged batch (N not a multiple of 8) + bf16 logits: exercises the padding
    # path and the reduced-HBM-traffic input dtype.
    N2, C2 = 37, 40
    logits2 = (jax.random.normal(k3, (N2, C2), dtype=jnp.float32) * 2.0).astype(jnp.bfloat16)
    labels2 = jax.random.randint(k4, (N2,), 0, C2, dtype=jnp.int32)
    out2 = jax.block_until_ready(nce_and_rce(logits2, labels2, 2.0, 0.5, "none"))
    ref2 = _nce_and_rce_ref(logits2, labels2, 2.0, 0.5, C2, "none")
    assert jnp.allclose(out2, ref2, rtol=1e-3, atol=1e-4), (out2, ref2)

    print("KERNEL_OK")
</pallas_src>

<mosaic_0001>
module attributes {stable_mosaic.version = 11 : i64} {
  func.func @_nce_rce_kernel(%arg0: i32, %arg1: memref<8x16xf32, #tpu.memory_space<vmem>>, %arg2: memref<8x1xi32, #tpu.memory_space<vmem>>, %arg3: memref<8x1xf32, #tpu.memory_space<vmem>>) attributes {dimension_semantics = [#tpu.dimension_semantics<parallel>], iteration_bounds = array<i64: 1>, scalar_prefetch = 0 : i64, scratch_operands = 0 : i64, tpu.core_type = #tpu.core_type<tc>, window_params = [{transform_indices = @transform_0, window_bounds = array<i64: 8, 16>}, {transform_indices = @transform_1, window_bounds = array<i64: 8, 1>}, {transform_indices = @transform_2, window_bounds = array<i64: 8, 1>}]} {
    %c0 = arith.constant 0 : index
    %c0_0 = arith.constant 0 : index
    %0 = vector.load %arg1[%c0, %c0_0] : memref<8x16xf32, #tpu.memory_space<vmem>>, vector<8x16xf32>
    %c0_1 = arith.constant 0 : index
    %c0_2 = arith.constant 0 : index
    %1 = vector.load %arg2[%c0_1, %c0_2] : memref<8x1xi32, #tpu.memory_space<vmem>>, vector<8x1xi32>
    %cst = arith.constant dense<0xFF800000> : vector<8xf32>
    %2 = vector.multi_reduction <maximumf>, %0, %cst [1] : vector<8x16xf32> to vector<8xf32>
    %3 = vector.shape_cast %2 : vector<8xf32> to vector<8x1xf32>
    %4 = vector.broadcast %3 : vector<8x1xf32> to vector<8x16xf32>
    %5 = arith.subf %0, %4 : vector<8x16xf32>
    %6 = math.exp %5 : vector<8x16xf32>
    %cst_3 = arith.constant dense<0.000000e+00> : vector<8xf32>
    %7 = vector.multi_reduction <add>, %6, %cst_3 [1] : vector<8x16xf32> to vector<8xf32>
    %8 = vector.shape_cast %7 : vector<8xf32> to vector<8x1xf32>
    %9 = math.log %8 : vector<8x1xf32>
    %10 = tpu.reciprocal %8 : vector<8x1xf32> -> vector<8x1xf32>
    %11 = tpu.iota {dimensions = array<i32: 1>} : vector<8x16xi32>
    %12 = vector.broadcast %1 : vector<8x1xi32> to vector<8x16xi32>
    %13 = arith.cmpi eq, %11, %12 : vector<8x16xi32>
    %14 = arith.extui %13 : vector<8x16xi1> to vector<8x16xi32>
    %15 = arith.sitofp %14 : vector<8x16xi32> to vector<8x16xf32>
    %16 = arith.mulf %15, %0 : vector<8x16xf32>
    %cst_4 = arith.constant dense<0.000000e+00> : vector<8xf32>
    %17 = vector.multi_reduction <add>, %16, %cst_4 [1] : vector<8x16xf32> to vector<8xf32>
    %18 = vector.shape_cast %17 : vector<8xf32> to vector<8x1xf32>
    %cst_5 = arith.constant dense<0.000000e+00> : vector<8xf32>
    %19 = vector.multi_reduction <add>, %0, %cst_5 [1] : vector<8x16xf32> to vector<8xf32>
    %20 = vector.shape_cast %19 : vector<8xf32> to vector<8x1xf32>
    %21 = arith.addf %3, %9 : vector<8x1xf32>
    %22 = arith.subf %21, %18 : vector<8x1xf32>
    %cst_6 = arith.constant 1.600000e+01 : f32
    %23 = vector.broadcast %cst_6 : f32 to vector<8x1xf32>
    %24 = arith.mulf %23, %21 : vector<8x1xf32>
    %25 = arith.subf %24, %20 : vector<8x1xf32>
    %26 = arith.divf %22, %25 : vector<8x1xf32>
    %27 = vector.broadcast %10 : vector<8x1xf32> to vector<8x16xf32>
    %28 = arith.mulf %6, %27 : vector<8x16xf32>
    %cst_7 = arith.constant 1.000000e-07 : f32
    %cst_8 = arith.constant 1.000000e+00 : f32
    %29 = vector.broadcast %cst_7 : f32 to vector<8x16xf32>
    %30 = arith.maximumf %29, %28 : vector<8x16xf32>
    %31 = vector.broadcast %cst_8 : f32 to vector<8x16xf32>
    %32 = arith.minimumf %31, %30 : vector<8x16xf32>
    %cst_9 = arith.constant dense<0.000000e+00> : vector<8xf32>
    %33 = vector.multi_reduction <add>, %32, %cst_9 [1] : vector<8x16xf32> to vector<8xf32>
    %34 = vector.shape_cast %33 : vector<8xf32> to vector<8x1xf32>
    %35 = arith.subf %18, %3 : vector<8x1xf32>
    %36 = math.exp %35 : vector<8x1xf32>
    %37 = arith.mulf %36, %10 : vector<8x1xf32>
    %cst_10 = arith.constant 1.000000e-07 : f32
    %cst_11 = arith.constant 1.000000e+00 : f32
    %38 = vector.broadcast %cst_10 : f32 to vector<8x1xf32>
    %39 = arith.maximumf %38, %37 : vector<8x1xf32>
    %40 = vector.broadcast %cst_11 : f32 to vector<8x1xf32>
    %41 = arith.minimumf %40, %39 : vector<8x1xf32>
    %42 = arith.subf %34, %41 : vector<8x1xf32>
    %cst_12 = arith.constant 9.21034049 : f32
    %43 = vector.broadcast %cst_12 : f32 to vector<8x1xf32>
    %44 = arith.mulf %43, %42 : vector<8x1xf32>
    %cst_13 = arith.constant 1.000000e+00 : f32
    %45 = vector.broadcast %cst_13 : f32 to vector<8x1xf32>
    %46 = arith.mulf %45, %26 : vector<8x1xf32>
    %cst_14 = arith.constant 1.000000e-01 : f32
    %47 = vector.broadcast %cst_14 : f32 to vector<8x1xf32>
    %48 = arith.mulf %47, %44 : vector<8x1xf32>
    %49 = arith.addf %46, %48 : vector<8x1xf32>
    %c0_15 = arith.constant 0 : index
    %c0_16 = arith.constant 0 : index
    %50 = vector.load %arg3[%c0_15, %c0_16] : memref<8x1xf32, #tpu.memory_space<vmem>>, vector<8x1xf32>
    tpu.vector_store %arg3[%c0_15, %c0_16], %49 {strides = array<i32>} : memref<8x1xf32, #tpu.memory_space<vmem>>, vector<8x1xf32>,
    return
  }
  func.func @transform_0(%arg0: i32) -> (i32, i32) {
    %c0_i32 = arith.constant 0 : i32
    %c0_i32_0 = arith.constant 0 : i32
    return %arg0, %c0_i32 : i32, i32
  }
  func.func @transform_1(%arg0: i32) -> (i32, i32) {
    %c0_i32 = arith.constant 0 : i32
    %c0_i32_0 = arith.constant 0 : i32
    return %arg0, %c0_i32 : i32, i32
  }
  func.func @transform_2(%arg0: i32) -> (i32, i32) {
    %c0_i32 = arith.constant 0 : i32
    %c0_i32_0 = arith.constant 0 : i32
    return %arg0, %c0_i32 : i32, i32
  }
}

</mosaic_0001>

<llo_original>
// kernel: tpu_custom_call.1
$region0: #{tpu_custom_call.1}
  #allocation0 [shape = 'u32[]', space=smem, size = 0x4, offset = 0x4, fixed_abs, tag = 'smem constant byte address 0x4 - core index']
  #allocation1 [shape = 'u32[144,128]{1,0:T(1,128)}', space=vmem, size = 0x12000, scoped, tag = 'internal scratch']
  %s0 = inlined_call_operand.vmem [shape: f32[8,16], index: 0, kind: input, shape index: {}]
  %s1 = inlined_call_operand.vmem [shape: s32[8,1], index: 1, kind: input, shape index: {}]
  %s2 = inlined_call_operand.vmem [shape: f32[8,1], index: 2, kind: output, shape index: {}]
  %s3 = sld [smem:[#allocation0]]
  $region18: #{tpu_custom_call.1} parent=0
    _
  %s5 = ssub.s32 1, %s3
  %s6 = scalar_select 0, %s5, %s3
  // Predicated region
  $region2: #{tpu_custom_call.1} parent=0 // pred_check
    _
  $region3: #{tpu_custom_call.1} parent=0 // pred_check_branch
    %8 = sbr.rel (0) target = $region5
  $region4: #{tpu_custom_call.1} parent=0 // pred_region
    _
  $region5: #{tpu_custom_call.1} parent=0 // pred_fallthru
    _
  // Predicated region
  $region6: #{tpu_custom_call.1} parent=0 // pred_check
    _
  $region7: #{tpu_custom_call.1} parent=0 // pred_check_branch
    %10 = sbr.rel (0) target = $region9
  $region8: #{tpu_custom_call.1} parent=0 // pred_region
    _
  $region9: #{tpu_custom_call.1} parent=0 // pred_fallthru
    _
  %v11 = vld [vmem:[%s0] sm:$0xff]
  %v12 = vld [vmem:[%s1] sm:$0xff]
  %vm13 = vcmask 130048
  %v14 = vsel %vm13, %v11, -inf
  %15 = vmax.xlane.f32.xlu0 %v14
  %v16 = vpop.xlane.xlu0 %15
  %v17 = vsub.f32 %v11, %v16
  %v18 = vmul.f32 %v17, 1.442695
  %v19 = vpow.pop %v18
  %v20 = vsel %vm13, %v19, 0.0
  %21 = vadd.xlane.f32.xlu0 %v20
  %v22 = vpop.xlane.xlu0 %21
  %v23 = vlog2.pop %v22
  %v24 = vmul.f32 %v23, 0.6931472
  %v25 = vrcp.pop %v22
  %v26 = vlaneseq
  %v27 = vand.u32 %v26, 127
  %28 = vset.pattern.permute.xlu0 0
  %29 = vperm.xlu0 %28, %v12
  %v30 = vpop.permute.xlu0 %29
  %vm31 = vcmp.eq.s32.totalorder %v27, %v30
  %v32 = vsel %vm31, 1, 0
  %v33 = vcvt.s32.f32 %v32
  %v34 = vmul.f32 %v33, %v11
  %v35 = vsel %vm13, %v34, 0.0
  %36 = vadd.xlane.f32.xlu0 %v35
  %v37 = vpop.xlane.xlu0 %36
  %v38 = vsel %vm13, %v11, 0.0
  %39 = vadd.xlane.f32.xlu0 %v38
  %v40 = vpop.xlane.xlu0 %39
  %v41 = vadd.f32 %v16, %v24
  %v42 = vsub.f32 %v41, %v37
  %v43 = vmul.f32 %v41, 16.0
  %v44 = vsub.f32 %v43, %v40
  %v45 = vrcp.pop %v44
  %v46 = vmul.f32 %v42, %v45
  %v47 = vmul.f32 %v19, %v25
  %v48 = vmax.f32 %v47, 1e-07
  %v49 = vmin.f32 %v48, 1.0
  %v50 = vsel %vm13, %v49, 0.0
  %51 = vadd.xlane.f32.xlu0 %v50
  %v52 = vpop.xlane.xlu0 %51
  %v53 = vsub.f32 %v37, %v16
  %v54 = vmul.f32 %v53, 1.442695
  %v55 = vpow.pop %v54
  %v56 = vmul.f32 %v55, %v25
  %v57 = vmax.f32 %v56, 1e-07
  %v58 = vmin.f32 %v57, 1.0
  %v59 = vsub.f32 %v52, %v58
  %v60 = vmul.f32 %v59, 9.2103405
  %v61 = vmul.f32 %v60, 0.1
  %v62 = vadd.f32 %v46, %v61
  %vm63 = vcmask 7168
  %64 = vst.msk [vmem:[%s2] sm:$0xff] %vm63, %v62
  // Predicated region
  $region10: #{tpu_custom_call.1} parent=0 // pred_check
    _
  $region11: #{tpu_custom_call.1} parent=0 // pred_check_branch
    %66 = sbr.rel (0) target = $region13
  $region12: #{tpu_custom_call.1} parent=0 // pred_region
    _
  $region13: #{tpu_custom_call.1} parent=0 // pred_fallthru
    _
  // Predicated region
  $region14: #{tpu_custom_call.1} parent=0 // pred_check
    _
  $region15: #{tpu_custom_call.1} parent=0 // pred_check_branch
    %68 = sbr.rel (0) target = $region17
  $region16: #{tpu_custom_call.1} parent=0 // pred_region
    _
  $region17: #{tpu_custom_call.1} parent=0 // pred_fallthru
    _

</llo_original>
